<compile_context>
chip_gen: v6e
topology: v6e:2x2x1
jax: 0.10.0
libtpu: 0.0.40
codegen_flags: <defaults>
</compile_context>

<pallas_src>
import jax
import jax.numpy as jnp
from jax.experimental import pallas as pl
from jax.experimental.pallas import tpu as pltpu

_MiB = 1024 * 1024


def _vmem_capacity_bytes(default: int = 64 * _MiB) -> int:
    """Physical per-core VMEM; conservative 64 MiB fallback if query fails."""
    try:
        info = pltpu.get_tpu_info()
        cap = getattr(info, "vmem_capacity_bytes", None)
        if cap:
            return int(cap)
    except Exception:
        pass
    return default


def _pick_tile_n(n: int, c: int, itemsize: int,
                 logits_budget_bytes: int, max_tile: int = 32768) -> int:
    """Largest row tile whose double-buffered VMEM footprint fits the budget."""
    # Sublane alignment for the logits dtype (8 f32, 16 bf16, 32 int8/fp8).
    align = max(8, 32 // max(1, itemsize))
    # Per-row, double-buffered VMEM: logits row + the (TN, 1) int32 label
    # column, which pads to 128 lanes in VMEM (512 B/row).
    per_row = 2 * (c * itemsize + 512)
    tile = int(min(max_tile, max(align, logits_budget_bytes // per_row)))
    tile = max(align, (tile // align) * align)
    # Keep at least 2 grid tiles so both v7x TensorCores get work
    # (harmless extra grid step on single-TC v5e/v6e).
    if n > 2 * align:
        half = ((n + 1) // 2 + align - 1) // align * align
        tile = min(tile, half)
    n_pad = (n + align - 1) // align * align
    return max(align, min(tile, n_pad))


def _make_ce_kernel(total_n: int, tile_n: int, num_classes: int):
    """Per-tile cross-entropy: writes one dense (1,8,128) partial-sum tile."""

    def ce_kernel(logits_ref, labels_ref, out_ref):
        i = pl.program_id(0)

        x = logits_ref[...]                      # (TN, C), native dtype
        labels = labels_ref[...]                 # (TN, 1) int32

        # Numerically stable shifted logits; the row max cancels in
        # logsumexp(x) - x[label], so xm serves both terms.  Stay in the
        # native dtype here; upcast to f32 only for exp / accumulation.
        m = jnp.max(x, axis=-1, keepdims=True)   # (TN, 1)
        xm = x - m                               # (TN, C)

        sumexp = jnp.sum(jnp.exp(xm.astype(jnp.float32)),
                         axis=-1, keepdims=True)               # (TN, 1) f32

        # One-hot pick of the target logit: broadcast a (1, C) iota against
        # the (TN, 1) labels instead of materializing a (TN, C) iota.
        col = jax.lax.broadcasted_iota(jnp.int32, (1, num_classes), 1)
        picked = jnp.where(col == labels, xm, jnp.zeros((), dtype=xm.dtype))
        tgt = jnp.sum(picked, axis=-1, keepdims=True).astype(jnp.float32)

        loss_rows = jnp.log(sumexp) - tgt        # (TN, 1) f32

        # Mask rows past the true batch (last tile may be partial: garbage
        # logits can yield NaN/Inf).  Must stay a select (jnp.where), NOT a
        # multiply-by-mask, so NaNs are discarded instead of propagated.
        row = i * tile_n + jax.lax.broadcasted_iota(jnp.int32, (tile_n, 1), 0)
        loss_rows = jnp.where(row < total_n, loss_rows, 0.0)

        tile_sum = jnp.sum(loss_rows)            # scalar partial sum

        # Lane/sublane-dense output tile: partial sum at [0,0,0], zeros
        # elsewhere -> one full unmasked vreg store per grid step.
        sub = jax.lax.broadcasted_iota(jnp.int32, (1, 8, 128), 1)
        lane = jax.lax.broadcasted_iota(jnp.int32, (1, 8, 128), 2)
        out_ref[...] = jnp.where((sub == 0) & (lane == 0), tile_sum, 0.0)

    return ce_kernel


def _jnp_ce(pred, y_fine):
    """XLA-fused fallback for tiny problems."""
    x = pred.astype(jnp.float32)
    m = jnp.max(x, axis=-1, keepdims=True)
    lse = jnp.log(jnp.sum(jnp.exp(x - m), axis=-1, keepdims=True)) + m
    tgt = jnp.take_along_axis(x, y_fine.astype(jnp.int32)[:, None], axis=1)
    return jnp.mean(lse - tgt)


def mixce_forward(pred, y_fine, y_coarse=None, train=True, *,
                  tile_n=None, force_pallas=False,
                  min_pallas_bytes=1 * _MiB):
    """Pallas equivalent of MixCE.forward (scalar mean CE over y_fine)."""
    del y_coarse, train  # unused by the reference forward
    n, c = pred.shape
    itemsize = jnp.dtype(pred.dtype).itemsize

    # Below ~1 MiB of logits the pallas_call launch/grid overhead dwarfs the
    # work (and with C << 128 lane utilization is poor): let XLA fuse it.
    if not force_pallas and n * c * itemsize < min_pallas_bytes:
        return _jnp_ce(pred, y_fine)

    vmem_cap = _vmem_capacity_bytes()
    # ~40 MiB of the 64 MiB v7x VMEM; 48 MiB on 128 MiB v5e/v6e.
    logits_budget = min(48 * _MiB, (vmem_cap * 5) // 8)
    vmem_limit = int(min(vmem_cap, logits_budget + 16 * _MiB))

    if tile_n is None:
        tile_n = _pick_tile_n(n, c, itemsize, logits_budget)
    num_tiles = pl.cdiv(n, tile_n)

    labels = y_fine.astype(jnp.int32).reshape(n, 1)

    # TODO(synk): for vocab-scale C that does not fit a single block, add a
    # second ("arbitrary") grid axis over C with an online logsumexp.
    kernel = _make_ce_kernel(n, tile_n, c)
    cost = pl.CostEstimate(
        flops=3 * n * c,
        transcendentals=n * c,
        bytes_accessed=n * c * itemsize + n * 4 + num_tiles * 8 * 128 * 4,
    )

    partial = pl.pallas_call(
        kernel,
        out_shape=jax.ShapeDtypeStruct((num_tiles, 8, 128), jnp.float32),
        grid_spec=pltpu.PrefetchScalarGridSpec(
            num_scalar_prefetch=0,
            grid=(num_tiles,),
            in_specs=[
                pl.BlockSpec((tile_n, c), lambda i: (i, 0)),
                pl.BlockSpec((tile_n, 1), lambda i: (i, 0)),
            ],
            out_specs=pl.BlockSpec((1, 8, 128), lambda i: (i, 0, 0)),
        ),
        compiler_params=pltpu.CompilerParams(
            dimension_semantics=("parallel",),
            vmem_limit_bytes=vmem_limit,
        ),
        cost_estimate=cost,
    )(pred, labels)

    # Only element [i, 0, 0] of each tile is nonzero; padded rows are 0.
    return jnp.sum(partial) / jnp.float32(n)


def _reference_ce(pred, y_fine):
    logp = jax.nn.log_softmax(pred.astype(jnp.float32), axis=-1)
    return -jnp.mean(logp[jnp.arange(pred.shape[0]), y_fine])


if __name__ == "__main__":
    # MixCE(fine_dim=32, coarse_dim=8) — fine_weights=None, reduction='mean'
    fine_dim = 32
    coarse_dim = 8
    batch = 16

    key = jax.random.PRNGKey(0)
    k_pred, k_fine, k_coarse = jax.random.split(key, 3)
    pred = jax.random.normal(k_pred, (batch, fine_dim), dtype=jnp.float32)
    y_fine = jax.random.randint(k_fine, (batch,), 0, fine_dim, dtype=jnp.int32)
    y_coarse = jax.random.randint(k_coarse, (batch,), 0, coarse_dim,
                                  dtype=jnp.int32)

    # Pallas path (forced: demo shapes are below the jnp-fallback threshold).
    loss = mixce_forward(pred, y_fine, y_coarse, force_pallas=True)
    jax.block_until_ready(loss)
    ref = _reference_ce(pred, y_fine)
    assert jnp.allclose(loss, ref, atol=1e-5, rtol=1e-5), (loss, ref)

    # Ragged-batch path: batch not divisible by tile_n exercises the row mask
    # and the multi-tile partial-sum output.
    batch2 = 13
    pred2 = jax.random.normal(jax.random.PRNGKey(1), (batch2, fine_dim),
                              dtype=jnp.float32)
    y2 = jax.random.randint(jax.random.PRNGKey(2), (batch2,), 0, fine_dim,
                            dtype=jnp.int32)
    loss2 = mixce_forward(pred2, y2, tile_n=8, force_pallas=True)
    jax.block_until_ready(loss2)
    ref2 = _reference_ce(pred2, y2)
    assert jnp.allclose(loss2, ref2, atol=1e-5, rtol=1e-5), (loss2, ref2)

    # Default path (small problem -> XLA-fused jnp fallback).
    loss3 = mixce_forward(pred, y_fine, y_coarse)
    jax.block_until_ready(loss3)
    assert jnp.allclose(loss3, ref, atol=1e-5, rtol=1e-5), (loss3, ref)

    print("KERNEL_OK")
</pallas_src>

<mosaic_0001>
module attributes {stable_mosaic.version = 11 : i64} {
  func.func @ce_kernel(%arg0: i32, %arg1: memref<16x32xf32, #tpu.memory_space<vmem>>, %arg2: memref<16x1xi32, #tpu.memory_space<vmem>>, %arg3: memref<1x8x128xf32, #tpu.memory_space<vmem>>) attributes {dimension_semantics = [#tpu.dimension_semantics<parallel>], iteration_bounds = array<i64: 1>, scalar_prefetch = 0 : i64, scratch_operands = 0 : i64, tpu.core_type = #tpu.core_type<tc>, window_params = [{transform_indices = @transform_0, window_bounds = array<i64: 16, 32>}, {transform_indices = @transform_1, window_bounds = array<i64: 16, 1>}, {transform_indices = @transform_2, window_bounds = array<i64: 1, 8, 128>}]} {
    %c0 = arith.constant 0 : index
    %c0_0 = arith.constant 0 : index
    %0 = vector.load %arg1[%c0, %c0_0] : memref<16x32xf32, #tpu.memory_space<vmem>>, vector<16x32xf32>
    %c0_1 = arith.constant 0 : index
    %c0_2 = arith.constant 0 : index
    %1 = vector.load %arg2[%c0_1, %c0_2] : memref<16x1xi32, #tpu.memory_space<vmem>>, vector<16x1xi32>
    %cst = arith.constant dense<0xFF800000> : vector<16xf32>
    %2 = vector.multi_reduction <maximumf>, %0, %cst [1] : vector<16x32xf32> to vector<16xf32>
    %3 = vector.shape_cast %2 : vector<16xf32> to vector<16x1xf32>
    %4 = vector.broadcast %3 : vector<16x1xf32> to vector<16x32xf32>
    %5 = arith.subf %0, %4 : vector<16x32xf32>
    %6 = math.exp %5 : vector<16x32xf32>
    %cst_3 = arith.constant dense<0.000000e+00> : vector<16xf32>
    %7 = vector.multi_reduction <add>, %6, %cst_3 [1] : vector<16x32xf32> to vector<16xf32>
    %8 = vector.shape_cast %7 : vector<16xf32> to vector<16x1xf32>
    %9 = tpu.iota {dimensions = array<i32: 1>} : vector<1x32xi32>
    %10 = vector.broadcast %9 : vector<1x32xi32> to vector<16x32xi32>
    %11 = vector.broadcast %1 : vector<16x1xi32> to vector<16x32xi32>
    %12 = arith.cmpi eq, %10, %11 : vector<16x32xi32>
    %cst_4 = arith.constant 0.000000e+00 : f32
    %13 = vector.broadcast %cst_4 : f32 to vector<16x32xf32>
    %14 = arith.select %12, %5, %13 : vector<16x32xi1>, vector<16x32xf32>
    %cst_5 = arith.constant dense<0.000000e+00> : vector<16xf32>
    %15 = vector.multi_reduction <add>, %14, %cst_5 [1] : vector<16x32xf32> to vector<16xf32>
    %16 = vector.shape_cast %15 : vector<16xf32> to vector<16x1xf32>
    %17 = math.log %8 : vector<16x1xf32>
    %18 = arith.subf %17, %16 : vector<16x1xf32>
    %c16_i32 = arith.constant 16 : i32
    %19 = arith.muli %arg0, %c16_i32 : i32
    %20 = tpu.iota {dimensions = array<i32: 0>} : vector<16x1xi32>
    %21 = vector.broadcast %19 : i32 to vector<16x1xi32>
    %22 = arith.addi %21, %20 : vector<16x1xi32>
    %c16_i32_6 = arith.constant 16 : i32
    %23 = vector.broadcast %c16_i32_6 : i32 to vector<16x1xi32>
    %24 = arith.cmpi slt, %22, %23 : vector<16x1xi32>
    %cst_7 = arith.constant 0.000000e+00 : f32
    %25 = vector.broadcast %cst_7 : f32 to vector<16x1xf32>
    %26 = arith.select %24, %18, %25 : vector<16x1xi1>, vector<16x1xf32>
    %27 = vector.shape_cast %26 : vector<16x1xf32> to vector<1x16x1xf32>
    %cst_8 = arith.constant dense<0.000000e+00> : vector<1xf32>
    %28 = vector.multi_reduction <add>, %27, %cst_8 [1, 2] : vector<1x16x1xf32> to vector<1xf32>
    %29 = vector.shape_cast %28 : vector<1xf32> to vector<1x1x1xf32>
    %30 = vector.extract %29[0, 0, 0] : f32 from vector<1x1x1xf32>
    %31 = tpu.iota {dimensions = array<i32: 1>} : vector<1x8x128xi32>
    %32 = tpu.iota {dimensions = array<i32: 2>} : vector<1x8x128xi32>
    %c0_i32 = arith.constant 0 : i32
    %33 = vector.broadcast %c0_i32 : i32 to vector<1x8x128xi32>
    %34 = arith.cmpi eq, %31, %33 : vector<1x8x128xi32>
    %c0_i32_9 = arith.constant 0 : i32
    %35 = vector.broadcast %c0_i32_9 : i32 to vector<1x8x128xi32>
    %36 = arith.cmpi eq, %32, %35 : vector<1x8x128xi32>
    %37 = arith.andi %34, %36 : vector<1x8x128xi1>
    %cst_10 = arith.constant 0.000000e+00 : f32
    %38 = vector.broadcast %30 : f32 to vector<1x8x128xf32>
    %39 = vector.broadcast %cst_10 : f32 to vector<1x8x128xf32>
    %40 = arith.select %37, %38, %39 : vector<1x8x128xi1>, vector<1x8x128xf32>
    %c0_11 = arith.constant 0 : index
    %c0_12 = arith.constant 0 : index
    %c0_13 = arith.constant 0 : index
    %41 = vector.load %arg3[%c0_11, %c0_12, %c0_13] : memref<1x8x128xf32, #tpu.memory_space<vmem>>, vector<1x8x128xf32>
    tpu.vector_store %arg3[%c0_11, %c0_12, %c0_13], %40 {strides = array<i32>} : memref<1x8x128xf32, #tpu.memory_space<vmem>>, vector<1x8x128xf32>,
    return
  }
  func.func @transform_0(%arg0: i32) -> (i32, i32) {
    %c0_i32 = arith.constant 0 : i32
    %c0_i32_0 = arith.constant 0 : i32
    return %arg0, %c0_i32 : i32, i32
  }
  func.func @transform_1(%arg0: i32) -> (i32, i32) {
    %c0_i32 = arith.constant 0 : i32
    %c0_i32_0 = arith.constant 0 : i32
    return %arg0, %c0_i32 : i32, i32
  }
  func.func @transform_2(%arg0: i32) -> (i32, i32, i32) {
    %c0_i32 = arith.constant 0 : i32
    %c0_i32_0 = arith.constant 0 : i32
    %c0_i32_1 = arith.constant 0 : i32
    return %arg0, %c0_i32, %c0_i32_0 : i32, i32, i32
  }
}

</mosaic_0001>

<llo_original>
// kernel: tpu_custom_call.1
$region0: #{tpu_custom_call.1}
  #allocation0 [shape = 'u32[]', space=smem, size = 0x4, offset = 0x4, fixed_abs, tag = 'smem constant byte address 0x4 - core index']
  #allocation1 [shape = 'u32[144,128]{1,0:T(1,128)}', space=vmem, size = 0x12000, scoped, tag = 'internal scratch']
  %s0 = inlined_call_operand.vmem [shape: f32[16,32], index: 0, kind: input, shape index: {}]
  %s1 = inlined_call_operand.vmem [shape: s32[16,1], index: 1, kind: input, shape index: {}]
  %s2 = inlined_call_operand.hbm [shape: f32[1,8,128], index: 2, kind: output, shape index: {}]
  %s3 = sld [smem:[#allocation0]]
  $region18: #{tpu_custom_call.1} parent=0
    _
  %s5 = ssub.s32 1, %s3
  %s6 = scalar_select 0, %s5, %s3
  $region1: #{tpu_custom_call.1} parent=0
    #allocation2 [shape = 'u8[4096]{0}', space=vmem, size = 0x1000, scoped, tag = 'output window, operand 0, single buffered']
    #allocation3 [shape = 's32[1]{0}', space=sflag, size = 0x4, scoped, tag = 'scoped memory for tpu_custom_call.1']
    %7 = vsyncpa [#allocation3], 0
    // Predicated region
    $region2: #{tpu_custom_call.1} parent=1 // pred_check
      _
    $region3: #{tpu_custom_call.1} parent=1 // pred_check_branch
      %9 = sbr.rel (0) target = $region5
    $region4: #{tpu_custom_call.1} parent=1 // pred_region
      _
    $region5: #{tpu_custom_call.1} parent=1 // pred_fallthru
      _
    // Predicated region
    $region6: #{tpu_custom_call.1} parent=1 // pred_check
      _
    $region7: #{tpu_custom_call.1} parent=1 // pred_check_branch
      %11 = sbr.rel (0) target = $region9
    $region8: #{tpu_custom_call.1} parent=1 // pred_region
      _
    $region9: #{tpu_custom_call.1} parent=1 // pred_fallthru
      _
    %v12 = vld [vmem:[%s0] sm:$0xff]
    %v13 = vld [vmem:[%s0 + $0x8] sm:$0xff]
    %v14 = vld [vmem:[%s1] sm:$0xff]
    %v15 = vld [vmem:[%s1 + $0x8] sm:$0xff]
    %vm16 = vcmask 261120
    %v17 = vsel %vm16, %v12, -inf
    %18 = vmax.xlane.f32.xlu0 %v17
    %v19 = vpop.xlane.xlu0 %18
    %v20 = vsel %vm16, %v13, -inf
    %21 = vmax.xlane.f32.xlu0 %v20
    %v22 = vpop.xlane.xlu0 %21
    %v23 = vsub.f32 %v12, %v19
    %v24 = vsub.f32 %v13, %v22
    %v25 = vmul.f32 %v23, 1.442695
    %v26 = vpow.pop %v25
    %v27 = vmul.f32 %v24, 1.442695
    %v28 = vpow.pop %v27
    %v29 = vsel %vm16, %v26, 0.0
    %30 = vadd.xlane.f32.xlu0 %v29
    %v31 = vpop.xlane.xlu0 %30
    %v32 = vsel %vm16, %v28, 0.0
    %33 = vadd.xlane.f32.xlu0 %v32
    %v34 = vpop.xlane.xlu0 %33
    %v35 = vlaneseq
    %v36 = vand.u32 %v35, 127
    %37 = vset.pattern.permute.xlu0 0
    %38 = vperm.xlu0 %37, %v14
    %v39 = vpop.permute.xlu0 %38
    %40 = vset.pattern.permute.xlu0 0
    %41 = vperm.xlu0 %40, %v15
    %v42 = vpop.permute.xlu0 %41
    %vm43 = vcmp.eq.s32.totalorder %v36, %v39
    %vm44 = vcmp.eq.s32.totalorder %v36, %v42
    %v45 = vsel %vm43, %v23, 0.0
    %v46 = vsel %vm44, %v24, 0.0
    %v47 = vsel %vm16, %v45, 0.0
    %48 = vadd.xlane.f32.xlu0 %v47
    %v49 = vpop.xlane.xlu0 %48
    %v50 = vsel %vm16, %v46, 0.0
    %51 = vadd.xlane.f32.xlu0 %v50
    %v52 = vpop.xlane.xlu0 %51
    %v53 = vlog2.pop %v31
    %v54 = vmul.f32 %v53, 0.6931472
    %v55 = vlog2.pop %v34
    %v56 = vmul.f32 %v55, 0.6931472
    %v57 = vsub.f32 %v54, %v49
    %v58 = vsub.f32 %v56, %v52
    %s59 = smul.u32 0, 16
    %v60 = vlaneseq
    %v61 = vshrl.u32 %v60, 7
    %v62 = vadd.s32 %v61, 8
    %v63 = vstv %s59
    %v64 = vadd.s32 %v63, %v61
    %v65 = vadd.s32 %v63, %v62
    %vm66 = vcmp.lt.s32.totalorder %v64, 16
    %vm67 = vcmp.lt.s32.totalorder %v65, 16
    %v68 = vsel %vm66, %v57, 0.0
    %v69 = vsel %vm67, %v58, 0.0
    %vm70 = vcmask 7168
    %v71 = vsel %vm70, %v68, 0.0
    %v72 = vsel %vm70, %v69, 0.0
    %v73 = vadd.f32 %v71, %v72
    %74 = vadd.xlane.f32.xlu0 %v73
    %v75 = vpop.xlane.xlu0 %74
    %v76 = vrot.slane %v75, 4
    %v77 = vadd.f32 %v75, %v76
    %v78 = vrot.slane %v77, 2
    %v79 = vadd.f32 %v77, %v78
    %v80 = vrot.slane %v79, 1
    %v81 = vadd.f32 %v79, %v80
    %s82 = vtos %v81
    %vm83 = vcmp.eq.s32.totalorder %v61, 0
    %vm84 = vcmp.eq.s32.totalorder %v36, 0
    %vm85 = vmand %vm83, %vm84
    %v86 = vstv %s82
    %v87 = vsel %vm85, %v86, 0.0
    %88 = vst [vmem:[#allocation2] sm:$0xff] %v87
    // Predicated region
    $region10: #{tpu_custom_call.1} parent=1 // pred_check
      _
    $region11: #{tpu_custom_call.1} parent=1 // pred_check_branch
      %90 = sbr.rel (0) target = $region13
    $region12: #{tpu_custom_call.1} parent=1 // pred_region
      %s92 = ssub.s32 128, 128
      %93 = vsyncadd [#allocation3], %s92
      %s95 = sshll.u32 [#allocation2], 4
      %s96 = int_to_ptr.vmem [resolvable:$true] %s95
      %98 = dma.vmem_to_hbm [thread:$0]  %s96, 128, %s2, [#allocation3]
    $region13: #{tpu_custom_call.1} parent=1 // pred_fallthru
      _
    // Predicated region
    $region14: #{tpu_custom_call.1} parent=1 // pred_check
      _
    $region15: #{tpu_custom_call.1} parent=1 // pred_check_branch
      %100 = sbr.rel (0) target = $region17
    $region16: #{tpu_custom_call.1} parent=1 // pred_region
      %101 = dma.done [#allocation3], 128
    $region17: #{tpu_custom_call.1} parent=1 // pred_fallthru
      _
    %102 = vsyncpa [#allocation3], 1

</llo_original>
